<compile_context>
chip_gen: v5e
topology: v5e:2x2
jax: 0.10.0
libtpu: 0.0.40
codegen_flags: <defaults>
</compile_context>

<pallas_src>
import jax
import jax.numpy as jnp
from jax.experimental import pallas as pl
from jax.experimental.pallas import tpu as pltpu


def attention_kernel(x_ref, wqkv_ref, w4_ref, o_ref):
    # x_ref    : (1, C, tT)   tile of the flattened input (channels x tokens)
    # wqkv_ref : (3*Cm, C)    fused conv1/conv2/conv3 weights (out, in)
    # w4_ref   : (C, Cm)      conv4 weight (out, in)
    # o_ref    : (1, C, tT)
    x = x_ref[0]                                   # (C, tT)
    cm = wqkv_ref.shape[0] // 3

    # One fused MXU push for q/k/v: (3*Cm, C) @ (C, tT) -> (3*Cm, tT)
    qkv = jnp.dot(wqkv_ref[...], x, preferred_element_type=jnp.float32)
    q = qkv[0 * cm:1 * cm]                         # (Cm, tT)
    k = qkv[1 * cm:2 * cm]
    v = qkv[2 * cm:3 * cm]

    # softmax over the channel (sublane) axis == PyTorch Softmax(dim=1)
    s = q * k
    m = jnp.max(s, axis=0, keepdims=True)
    e = jnp.exp(s - m)
    denom = jnp.sum(e, axis=0, keepdims=True)
    gate = e * pl.reciprocal(denom, approx=True)   # EUP vrcp; VALU stays free

    gated = gate * v                               # (Cm, tT)
    out = jnp.dot(w4_ref[...], gated, preferred_element_type=jnp.float32)
    # residual add + lane-dense (token-axis) store
    o_ref[0] = (out + x).astype(o_ref.dtype)


def attention_pallas(x_nchw, w1, w2, w3, w4, *, max_tile_tokens=2048):
    """x_nchw: (N, C, H, W). w1/w2/w3: (Cm, C, 1, 1). w4: (C, Cm, 1, 1)."""
    N, C, H, W = x_nchw.shape
    Cm = w1.shape[0]
    HW = H * W

    # NCHW -> (N, C, H*W): pure reshape, no transpose.
    x3d = x_nchw.reshape(N, C, HW)

    # Fuse q/k/v conv weights into one (3*Cm, C) matrix; conv4 -> (C, Cm).
    wqkv = jnp.concatenate(
        [w1.reshape(Cm, C), w2.reshape(Cm, C), w3.reshape(Cm, C)], axis=0)
    w4m = w4.reshape(C, Cm)

    # Token tile: large lane-dense tile (multiple of 128) when the spatial
    # extent is big, otherwise the full extent.  Pad the token axis to a tile
    # multiple so any H*W works (no divisibility assert); padded tokens are
    # computed independently and sliced off.
    t_tok = HW if HW <= max_tile_tokens else max_tile_tokens
    hw_pad = ((HW + t_tok - 1) // t_tok) * t_tok
    if hw_pad != HW:
        x3d = jnp.pad(x3d, ((0, 0), (0, 0), (0, hw_pad - HW)))

    grid = (N, hw_pad // t_tok)

    # VMEM footprint per step: 2 * C * t_tok * 4B (in+out, double-buffered)
    # ~= 1 MiB at t_tok=2048, C=32 -> far below every generation's scoped
    # VMEM default, so no vmem_limit_bytes override is needed.
    out3d = pl.pallas_call(
        attention_kernel,
        out_shape=jax.ShapeDtypeStruct((N, C, hw_pad), x_nchw.dtype),
        grid_spec=pltpu.PrefetchScalarGridSpec(
            num_scalar_prefetch=0,
            grid=grid,
            in_specs=[
                pl.BlockSpec((1, C, t_tok), lambda n, t: (n, 0, t)),
                pl.BlockSpec((3 * Cm, C), lambda n, t: (0, 0)),
                pl.BlockSpec((C, Cm), lambda n, t: (0, 0)),
            ],
            out_specs=pl.BlockSpec((1, C, t_tok), lambda n, t: (n, 0, t)),
        ),
        compiler_params=pltpu.CompilerParams(
            # both grid axes independent -> sharded across TCs (v7x megacore)
            dimension_semantics=("parallel", "parallel"),
        ),
    )(x3d, wqkv, w4m)

    if hw_pad != HW:
        out3d = out3d[:, :, :HW]
    return out3d.reshape(N, C, H, W)


def attention_ref(x, w1, w2, w3, w4):
    """Pure-JAX reference matching the PyTorch forward (NCHW throughout)."""
    N, C, H, W = x.shape
    Cm = w1.shape[0]
    w1m, w2m, w3m = (w.reshape(Cm, C) for w in (w1, w2, w3))
    w4m = w4.reshape(C, Cm)
    q = jnp.einsum('mc,nchw->nmhw', w1m, x)
    k = jnp.einsum('mc,nchw->nmhw', w2m, x)
    v = jnp.einsum('mc,nchw->nmhw', w3m, x)
    gate = jax.nn.softmax(q * k, axis=1)
    out = jnp.einsum('cm,nmhw->nchw', w4m, gate * v)
    return out + x


if __name__ == "__main__":
    key = jax.random.PRNGKey(0)
    N, C, H, W = 2, 32, 16, 16          # in_channel=32 -> mid_channel=4
    Cm = C // 8

    k_x, k1, k2, k3, k4 = jax.random.split(key, 5)
    x = jax.random.normal(k_x, (N, C, H, W), dtype=jnp.float32)
    # PyTorch conv weight shape: (out, in, 1, 1)
    w1 = jax.random.normal(k1, (Cm, C, 1, 1), dtype=jnp.float32) * 0.1
    w2 = jax.random.normal(k2, (Cm, C, 1, 1), dtype=jnp.float32) * 0.1
    w3 = jax.random.normal(k3, (Cm, C, 1, 1), dtype=jnp.float32) * 0.1
    w4 = jax.random.normal(k4, (C, Cm, 1, 1), dtype=jnp.float32) * 0.1

    out = attention_pallas(x, w1, w2, w3, w4)
    out = jax.block_until_ready(out)

    ref = attention_ref(x, w1, w2, w3, w4)
    assert out.shape == (N, C, H, W)
    # approx reciprocal in the softmax denominator -> slightly looser tolerance
    assert jnp.allclose(out, ref, atol=2e-3, rtol=2e-3), "mismatch vs reference"
    print("KERNEL_OK")
</pallas_src>

<mosaic_0001>
module attributes {stable_mosaic.version = 11 : i64} {
  func.func @attention_kernel(%arg0: i32, %arg1: i32, %arg2: memref<1x32x256xf32, #tpu.memory_space<vmem>>, %arg3: memref<12x32xf32, #tpu.memory_space<vmem>>, %arg4: memref<32x4xf32, #tpu.memory_space<vmem>>, %arg5: memref<1x32x256xf32, #tpu.memory_space<vmem>>) attributes {dimension_semantics = [#tpu.dimension_semantics<parallel>, #tpu.dimension_semantics<parallel>], iteration_bounds = array<i64: 2, 1>, scalar_prefetch = 0 : i64, scratch_operands = 0 : i64, tpu.core_type = #tpu.core_type<tc>, window_params = [{transform_indices = @transform_0, window_bounds = array<i64: 1, 32, 256>}, {pipeline_mode = #tpu.pipeline_mode<synchronous>, transform_indices = @transform_1, window_bounds = array<i64: 12, 32>}, {pipeline_mode = #tpu.pipeline_mode<synchronous>, transform_indices = @transform_2, window_bounds = array<i64: 32, 4>}, {transform_indices = @transform_3, window_bounds = array<i64: 1, 32, 256>}]} {
    %c0 = arith.constant 0 : index
    %c0_0 = arith.constant 0 : index
    %c0_1 = arith.constant 0 : index
    %0 = vector.load %arg2[%c0, %c0_0, %c0_1] : memref<1x32x256xf32, #tpu.memory_space<vmem>>, vector<1x32x256xf32>
    %1 = vector.shape_cast %0 : vector<1x32x256xf32> to vector<32x256xf32>
    %c0_2 = arith.constant 0 : index
    %c0_3 = arith.constant 0 : index
    %2 = vector.load %arg3[%c0_2, %c0_3] : memref<12x32xf32, #tpu.memory_space<vmem>>, vector<12x32xf32>
    %cst = arith.constant dense<0.000000e+00> : vector<12x256xf32>
    %3 = tpu.matmul %2, %1, %cst {dimension_numbers = #tpu.dot_dimension_numbers<[1], [0], [0], [1], [0, 0, 1, 1], [], []>} : vector<12x32xf32>, vector<32x256xf32>, vector<12x256xf32> -> vector<12x256xf32>
    %4 = vector.extract_strided_slice %3 {offsets = [0, 0], sizes = [4, 256], strides = [1, 1]} : vector<12x256xf32> to vector<4x256xf32>
    %5 = vector.extract_strided_slice %3 {offsets = [4, 0], sizes = [4, 256], strides = [1, 1]} : vector<12x256xf32> to vector<4x256xf32>
    %6 = vector.extract_strided_slice %3 {offsets = [8, 0], sizes = [4, 256], strides = [1, 1]} : vector<12x256xf32> to vector<4x256xf32>
    %7 = arith.mulf %4, %5 : vector<4x256xf32>
    %cst_4 = arith.constant dense<0xFF800000> : vector<256xf32>
    %8 = vector.multi_reduction <maximumf>, %7, %cst_4 [0] : vector<4x256xf32> to vector<256xf32>
    %9 = vector.shape_cast %8 : vector<256xf32> to vector<1x256xf32>
    %10 = vector.broadcast %9 : vector<1x256xf32> to vector<4x256xf32>
    %11 = arith.subf %7, %10 : vector<4x256xf32>
    %12 = math.exp %11 : vector<4x256xf32>
    %cst_5 = arith.constant dense<0.000000e+00> : vector<256xf32>
    %13 = vector.multi_reduction <add>, %12, %cst_5 [0] : vector<4x256xf32> to vector<256xf32>
    %14 = vector.shape_cast %13 : vector<256xf32> to vector<1x256xf32>
    %15 = tpu.reciprocal %14 {approx = true} : vector<1x256xf32> -> vector<1x256xf32>
    %16 = vector.broadcast %15 : vector<1x256xf32> to vector<4x256xf32>
    %17 = arith.mulf %12, %16 : vector<4x256xf32>
    %18 = arith.mulf %17, %6 : vector<4x256xf32>
    %c0_6 = arith.constant 0 : index
    %c0_7 = arith.constant 0 : index
    %19 = vector.load %arg4[%c0_6, %c0_7] : memref<32x4xf32, #tpu.memory_space<vmem>>, vector<32x4xf32>
    %cst_8 = arith.constant dense<0.000000e+00> : vector<32x256xf32>
    %20 = tpu.matmul %19, %18, %cst_8 {dimension_numbers = #tpu.dot_dimension_numbers<[1], [0], [0], [1], [0, 0, 1, 1], [], []>} : vector<32x4xf32>, vector<4x256xf32>, vector<32x256xf32> -> vector<32x256xf32>
    %21 = arith.addf %20, %1 : vector<32x256xf32>
    %c0_9 = arith.constant 0 : index
    %c0_10 = arith.constant 0 : index
    %c0_11 = arith.constant 0 : index
    %22 = vector.load %arg5[%c0_9, %c0_10, %c0_11] : memref<1x32x256xf32, #tpu.memory_space<vmem>>, vector<1x32x256xf32>
    %23 = vector.shape_cast %22 : vector<1x32x256xf32> to vector<32x256xf32>
    %24 = vector.shape_cast %21 : vector<32x256xf32> to vector<1x32x256xf32>
    tpu.vector_store %arg5[%c0_9, %c0_10, %c0_11], %24 {strides = array<i32>} : memref<1x32x256xf32, #tpu.memory_space<vmem>>, vector<1x32x256xf32>,
    return
  }
  func.func @transform_0(%arg0: i32, %arg1: i32) -> (i32, i32, i32) {
    %c0_i32 = arith.constant 0 : i32
    %c0_i32_0 = arith.constant 0 : i32
    return %arg0, %c0_i32, %arg1 : i32, i32, i32
  }
  func.func @transform_1(%arg0: i32, %arg1: i32) -> (i32, i32) {
    %c0_i32 = arith.constant 0 : i32
    %c0_i32_0 = arith.constant 0 : i32
    %c0_i32_1 = arith.constant 0 : i32
    return %c0_i32, %c0_i32_0 : i32, i32
  }
  func.func @transform_2(%arg0: i32, %arg1: i32) -> (i32, i32) {
    %c0_i32 = arith.constant 0 : i32
    %c0_i32_0 = arith.constant 0 : i32
    %c0_i32_1 = arith.constant 0 : i32
    return %c0_i32, %c0_i32_0 : i32, i32
  }
  func.func @transform_3(%arg0: i32, %arg1: i32) -> (i32, i32, i32) {
    %c0_i32 = arith.constant 0 : i32
    %c0_i32_0 = arith.constant 0 : i32
    return %arg0, %c0_i32, %arg1 : i32, i32, i32
  }
}

</mosaic_0001>

<llo_original>
// kernel: tpu_custom_call.1
$region0: #{tpu_custom_call.1}
  #allocation0 [shape = 'u32[]', space=smem, size = 0x4, offset = 0x4, fixed_abs, tag = 'smem constant byte address 0x4 - core index']
  #allocation1 [shape = 'u32[72,128]{1,0:T(1,128)}', space=vmem, size = 0x9000, scoped, tag = 'internal scratch']
  %s0 = inlined_call_operand.hbm [shape: f32[2,32,256], index: 0, kind: input, shape index: {}]
  %s1 = inlined_call_operand.vmem [shape: f32[12,32], index: 1, kind: input, shape index: {}]
  %s2 = inlined_call_operand.vmem [shape: f32[32,4], index: 2, kind: input, shape index: {}]
  %s3 = inlined_call_operand.hbm [shape: f32[2,32,256], index: 3, kind: output, shape index: {}]
  %s4 = sld [smem:[#allocation0]]
  $region49: #{tpu_custom_call.1} parent=0
    _
  %s6 = ssub.s32 1, %s4
  %s7 = scalar_select 0, %s6, %s4
  $region1: #{tpu_custom_call.1} parent=0
    #allocation2 [shape = 'u8[65536]{0}', space=vmem, size = 0x10000, scoped, tag = 'input window, operand 0']
    #allocation3 [shape = 's32[2]{0}', space=sflag, size = 0x8, scoped, tag = 'scoped memory for tpu_custom_call.1']
    #allocation4 [shape = 's32[2]{0}', space=sflag, size = 0x8, scoped, tag = 'scoped memory for tpu_custom_call.1']
    #allocation5 [shape = 'u8[65536]{0}', space=vmem, size = 0x10000, scoped, tag = 'output window, operand 0']
    %8 = vsyncpa [#allocation3], 0
    %s9 = scalar_lea.sflag [#allocation3], 1
    %10 = vsyncpa %s9, 0
    %11 = vsyncpa [#allocation4], 0
    %s12 = scalar_lea.sflag [#allocation4], 1
    %13 = vsyncpa %s12, 0
    loop: start=0, step=1, limit=4
    $region2: #{tpu_custom_call.1} parent=1 // loop_pre_header
      _
    $region3: #{tpu_custom_call.1} parent=1 // loop_header
      %s15 = sphi 0, %s19
      %p16 = scmp.ge.s32.totalorder %s15, 4
      %s22 = sphi 0, %s34
      %s23 = sphi 0, %s30
      %s24 = sphi 0, %s22
      %s25 = sphi 0, %s23
      %s26 = sphi 0, %s24
      %s27 = sphi 0, %s25
      %s39 = sphi 0, %s41
      %s42 = sphi 0, %s39
      %s43 = sphi 0, %s42
      %s59 = sphi 0, %s43
      %s63 = sphi 0, %s63
      %s65 = sphi 0, %s63
      %s66 = sphi 0, %s65
      %s80 = sphi 0, %s66
      %s84 = sphi 0, %s84
      %s86 = sphi 0, %s84
      %s87 = sphi 0, %s86
      %s101 = sphi 0, %s87
      %s109 = sphi 0, %s111
      %s112 = sphi 0, %s109
      %s113 = sphi 0, %s112
      %s129 = sphi 0, %s113
    $region4: #{tpu_custom_call.1} parent=1 // loop_header_branch
      %18 = sbr.rel (%p16) target = $region8
    $region5: #{tpu_custom_call.1} parent=1 // loop_body
      %s20 = ssub.s32 %s15, 1
      %s21 = ssub.s32 %s15, 2
      %s28 = sadd.s32 1, %s23
      %p29 = scmp.ge.s32.totalorder %s28, 1
      %s30 = scalar_select %p29, 0, %s28
      %s31 = sadd.s32 1, %s22
      %s32 = scalar_select %p29, %s31, %s22
      %p33 = scmp.ge.s32.totalorder %s32, 2
      %s34 = scalar_select %p33, 0, %s32
      %s35 = ssub.s32 %s22, %s34
      %s36 = ssub.s32 %s23, %s30
      %s37 = sor.u32 %s35, %s36
      %p38 = scmp.eq.s32.totalorder %s37, 0
      %s40 = sadd.s32 %s39, 1
      %s41 = scalar_select %p38, %s39, %s40
      %p44 = pneg %p38
      %p45 = scmp.eq.s32.totalorder %s15, 1
      %p46 = por %p44, %p45
      %p47 = scmp.ne.s32.totalorder %s39, %s42
      %p48 = scmp.eq.s32.totalorder %s15, 0
      %p49 = por %p47, %p48
      %p50 = scmp.ne.s32.totalorder %s39, %s42
      %p51 = scmp.eq.s32.totalorder %s20, 1
      %p52 = por %p50, %p51
      %p53 = scmp.ne.s32.totalorder %s42, %s43
      %p54 = scmp.eq.s32.totalorder %s20, 0
      %p55 = por %p53, %p54
      %p56 = scmp.ne.s32.totalorder %s42, %s43
      %p57 = scmp.eq.s32.totalorder %s21, 1
      %p58 = por %p56, %p57
      %p60 = scmp.ne.s32.totalorder %s43, %s59
      %p61 = scmp.eq.s32.totalorder %s21, 0
      %p62 = por %p60, %p61
      %s64 = sadd.s32 %s63, 1
      %p67 = scmp.eq.s32.totalorder %s15, 1
      %p68 = scmp.ne.s32.totalorder %s63, %s65
      %p69 = scmp.eq.s32.totalorder %s15, 0
      %p70 = por %p68, %p69
      %p71 = scmp.ne.s32.totalorder %s63, %s65
      %p72 = scmp.eq.s32.totalorder %s20, 1
      %p73 = por %p71, %p72
      %p74 = scmp.ne.s32.totalorder %s65, %s66
      %p75 = scmp.eq.s32.totalorder %s20, 0
      %p76 = por %p74, %p75
      %p77 = scmp.ne.s32.totalorder %s65, %s66
      %p78 = scmp.eq.s32.totalorder %s21, 1
      %p79 = por %p77, %p78
      %p81 = scmp.ne.s32.totalorder %s66, %s80
      %p82 = scmp.eq.s32.totalorder %s21, 0
      %p83 = por %p81, %p82
      %s85 = sadd.s32 %s84, 1
      %p88 = scmp.eq.s32.totalorder %s15, 1
      %p89 = scmp.ne.s32.totalorder %s84, %s86
      %p90 = scmp.eq.s32.totalorder %s15, 0
      %p91 = por %p89, %p90
      %p92 = scmp.ne.s32.totalorder %s84, %s86
      %p93 = scmp.eq.s32.totalorder %s20, 1
      %p94 = por %p92, %p93
      %p95 = scmp.ne.s32.totalorder %s86, %s87
      %p96 = scmp.eq.s32.totalorder %s20, 0
      %p97 = por %p95, %p96
      %p98 = scmp.ne.s32.totalorder %s86, %s87
      %p99 = scmp.eq.s32.totalorder %s21, 1
      %p100 = por %p98, %p99
      %p102 = scmp.ne.s32.totalorder %s87, %s101
      %p103 = scmp.eq.s32.totalorder %s21, 0
      %p104 = por %p102, %p103
      %s105 = ssub.s32 %s22, %s34
      %s106 = ssub.s32 %s23, %s30
      %s107 = sor.u32 %s105, %s106
      %p108 = scmp.eq.s32.totalorder %s107, 0
      %s110 = sadd.s32 %s109, 1
      %s111 = scalar_select %p108, %s109, %s110
      %p114 = pneg %p108
      %p115 = scmp.eq.s32.totalorder %s15, 1
      %p116 = por %p114, %p115
      %p117 = scmp.ne.s32.totalorder %s109, %s112
      %p118 = scmp.eq.s32.totalorder %s15, 0
      %p119 = por %p117, %p118
      %p120 = scmp.ne.s32.totalorder %s109, %s112
      %p121 = scmp.eq.s32.totalorder %s20, 1
      %p122 = por %p120, %p121
      %p123 = scmp.ne.s32.totalorder %s112, %s113
      %p124 = scmp.eq.s32.totalorder %s20, 0
      %p125 = por %p123, %p124
      %p126 = scmp.ne.s32.totalorder %s112, %s113
      %p127 = scmp.eq.s32.totalorder %s21, 1
      %p128 = por %p126, %p127
      %p130 = scmp.ne.s32.totalorder %s113, %s129
      %p131 = scmp.eq.s32.totalorder %s21, 0
      %p132 = por %p130, %p131
      %p133 = scmp.le.s32.totalorder 1, %s15
      %p134 = scmp.lt.s32.totalorder %s15, 3
      %p135 = pnand %p133, %p134
      %p136 = pneg %p135
      // Predicated region
      $region9: #{tpu_custom_call.1} parent=5 // pred_check
        _
      $region10: #{tpu_custom_call.1} parent=5 // pred_check_branch
        %138 = sbr.rel (%p135) target = $region12
      $region11: #{tpu_custom_call.1} parent=5 // pred_region
        %s139 = ssub.s32 %s15, 1
        // Predicated region
        $region13: #{tpu_custom_call.1} parent=11 // pred_check
          %p140 = pneg %p76
        $region14: #{tpu_custom_call.1} parent=11 // pred_check_branch
          %142 = sbr.rel (%p140) target = $region16
        $region15: #{tpu_custom_call.1} parent=11 // pred_region
          _
        $region16: #{tpu_custom_call.1} parent=11 // pred_fallthru
          _
        // Predicated region
        $region17: #{tpu_custom_call.1} parent=11 // pred_check
          %p143 = pneg %p97
        $region18: #{tpu_custom_call.1} parent=11 // pred_check_branch
          %145 = sbr.rel (%p143) target = $region20
        $region19: #{tpu_custom_call.1} parent=11 // pred_region
          _
        $region20: #{tpu_custom_call.1} parent=11 // pred_fallthru
          _
      $region12: #{tpu_custom_call.1} parent=5 // pred_fallthru
        _
      %p146 = scmp.lt.s32.totalorder %s15, 2
      // Predicated region
      $region21: #{tpu_custom_call.1} parent=5 // pred_check
        %p147 = pneg %p146
      $region22: #{tpu_custom_call.1} parent=5 // pred_check_branch
        %149 = sbr.rel (%p147) target = $region24
      $region23: #{tpu_custom_call.1} parent=5 // pred_region
        // Predicated region
        $region25: #{tpu_custom_call.1} parent=23 // pred_check
          %p150 = pneg %p49
        $region26: #{tpu_custom_call.1} parent=23 // pred_check_branch
          %152 = sbr.rel (%p150) target = $region28
        $region27: #{tpu_custom_call.1} parent=23 // pred_region
          %s153 = sand.u32 %s39, 1
          %s154 = scalar_lea.sflag [#allocation3], %s153
          %s155 = sand.u32 %s39, 1
          %s156 = smul.addr %s155, 64
          %s157 = scalar_lea.vmem [#allocation2], %s156
          %s158 = smul.u32 2, %s23
          %160 = vsyncadd %s154, 0
          %s161 = smul.addr %s22, 8
          %s162 = sadd.s32 %s158, %s161
          %s163 = smul.addr %s162, 8
          %s164 = scalar_lea.hbm %s0, %s163
          %s165 = sshll.u32 %s164, 4
          %s166 = int_to_ptr.hbm [resolvable:$true] %s165
          %s167 = sshll.u32 %s157, 4
          %s168 = int_to_ptr.vmem [resolvable:$true] %s167
          %173 = dma.hbm_to_vmem [thread:$0]  %s166, 1024, %s168, %s154, 256, 256, 16
        $region28: #{tpu_custom_call.1} parent=23 // pred_fallthru
          _
      $region24: #{tpu_custom_call.1} parent=5 // pred_fallthru
        _
      %p174 = scmp.le.s32.totalorder 1, %s15
      %p175 = scmp.lt.s32.totalorder %s15, 3
      %p176 = pnand %p174, %p175
      %p177 = pneg %p176
      // Predicated region
      $region29: #{tpu_custom_call.1} parent=5 // pred_check
        _
      $region30: #{tpu_custom_call.1} parent=5 // pred_check_branch
        %179 = sbr.rel (%p176) target = $region32
      $region31: #{tpu_custom_call.1} parent=5 // pred_region
        %s180 = ssub.s32 %s15, 1
        %s181 = sand.u32 %s42, 1
        %s182 = scalar_lea.sflag [#allocation3], %s181
        %s183 = sand.u32 %s42, 1
        %s184 = smul.addr %s183, 64
        %s185 = scalar_lea.vmem [#allocation2], %s184
        // Predicated region
        $region33: #{tpu_custom_call.1} parent=31 // pred_check
          %p186 = pneg %p55
        $region34: #{tpu_custom_call.1} parent=31 // pred_check_branch
          %188 = sbr.rel (%p186) target = $region36
        $region35: #{tpu_custom_call.1} parent=31 // pred_region
          %190 = dma.done %s182, 1024
        $region36: #{tpu_custom_call.1} parent=31 // pred_fallthru
          _
        %s191 = sand.u32 %s42, 1
        %s192 = scalar_lea.sflag [#allocation3], %s191
        %s193 = sand.u32 %s42, 1
        %s194 = smul.addr %s193, 64
        %s195 = scalar_lea.vmem [#allocation2], %s194
        %p196 = pneg %p55
        %p197 = pneg %p52
        %p198 = pneg %p76
        %p199 = pneg %p73
        %p200 = pneg %p97
        %p201 = pneg %p94
        %p202 = pneg %p125
        %p203 = pneg %p122
        %s204 = sand.u32 %s112, 1
        %s205 = scalar_lea.sflag [#allocation4], %s204
        %s206 = sand.u32 %s112, 1
        %s207 = smul.addr %s206, 64
        %s208 = scalar_lea.vmem [#allocation5], %s207
        %s209 = smul.u32 2, %s25
        %s210 = smul.u32 2, %s25
        %v211 = vld [vmem:[%s185] sm:$0xff]
        %v212 = vld [vmem:[%s185 + $0x8] sm:$0xff]
        %v213 = vld [vmem:[%s185 + $0x10] sm:$0xff]
        %v214 = vld [vmem:[%s185 + $0x18] sm:$0xff]
        %v215 = vld [vmem:[%s185 + $0x20] sm:$0xff]
        %v216 = vld [vmem:[%s185 + $0x28] sm:$0xff]
        %v217 = vld [vmem:[%s185 + $0x30] sm:$0xff]
        %v218 = vld [vmem:[%s185 + $0x38] sm:$0xff]
        %v219 = vld [vmem:[%s1] sm:$0xff]
        %v220 = vld [vmem:[%s1 + $0x8] sm:$0xf]
        %vm221 = vcmask 261120
        %v223 = vsel %vm221, %v219, 0
        %v226 = vsel %vm221, %v220, 0
        %228 = vmatpush.msra.mxu0 0.0
        %229 = vmatpush.msra.mxu0 0.0
        %230 = vmatpush.msra.mxu0 0.0
        %231 = vmatpush.msra.mxu0 0.0
        %232 = vmatpush.msra.mxu0 0.0
        %233 = vmatpush.msra.mxu0 0.0
        %234 = vmatpush.msra.mxu0 0.0
        %235 = vmatpush.msra.mxu0 0.0
        %236 = vmatpush.msra.mxu0 0.0
        %237 = vmatpush.msra.mxu0 0.0
        %238 = vmatpush.msra.mxu0 0.0
        %239 = vmatpush.msra.mxu0 0.0
        %240 = vmatpush.msra.mxu0 %v217
        %241 = vmatpush.msra.mxu0 %v215
        %242 = vmatpush.msra.mxu0 %v213
        %243 = vmatpush.msra.mxu0 %v211
        %244 = vmatmul.f32.gmra.mxu0 %v223
        %v245 = vpop.f32.mrf.mxu0
        %v246 = vadd.f32 0.0, %v245
        %247 = vmatmul.f32.gmra.mxu0 %v226
        %v248 = vpop.f32.mrf.mxu0
        %v249 = vadd.f32 0.0, %v248
        %250 = vdwg.mxu0
        %251 = vmatpush.msra.mxu0 0.0
        %252 = vmatpush.msra.mxu0 0.0
        %253 = vmatpush.msra.mxu0 0.0
        %254 = vmatpush.msra.mxu0 0.0
        %255 = vmatpush.msra.mxu0 0.0
        %256 = vmatpush.msra.mxu0 0.0
        %257 = vmatpush.msra.mxu0 0.0
        %258 = vmatpush.msra.mxu0 0.0
        %259 = vmatpush.msra.mxu0 0.0
        %260 = vmatpush.msra.mxu0 0.0
        %261 = vmatpush.msra.mxu0 0.0
        %262 = vmatpush.msra.mxu0 0.0
        %263 = vmatpush.msra.mxu0 %v218
        %264 = vmatpush.msra.mxu0 %v216
        %265 = vmatpush.msra.mxu0 %v214
        %266 = vmatpush.msra.mxu0 %v212
        %267 = vmatmul.f32.gmra.mxu0 %v223
        %v268 = vpop.f32.mrf.mxu0
        %v269 = vadd.f32 0.0, %v268
        %270 = vmatmul.f32.gmra.mxu0 %v226
        %v271 = vpop.f32.mrf.mxu0
        %v272 = vadd.f32 0.0, %v271
        %273 = vdwg.mxu0
        %v276 = vrot.slane %v246, 4
        %v277 = vrot.slane %v269, 4
        %v280 = vmul.f32 %v246, %v276
        %v281 = vmul.f32 %v269, %v277
        %vm282 = vcmask 1043456
        %v283 = vsel %vm282, %v280, -inf
        %v284 = vrot.slane %v283, 4
        %v285 = vmax.f32 %v283, %v284
        %v286 = vrot.slane %v285, 2
        %v287 = vmax.f32 %v285, %v286
        %v288 = vrot.slane %v287, 1
        %v289 = vmax.f32 %v287, %v288
        %v290 = vsel %vm282, %v281, -inf
        %v291 = vrot.slane %v290, 4
        %v292 = vmax.f32 %v290, %v291
        %v293 = vrot.slane %v292, 2
        %v294 = vmax.f32 %v292, %v293
        %v295 = vrot.slane %v294, 1
        %v296 = vmax.f32 %v294, %v295
        %v297 = vsub.f32 %v280, %v289
        %v298 = vsub.f32 %v281, %v296
        %v299 = vmul.f32 %v297, 1.442695
        %v300 = vpow.pop %v299
        %v301 = vmul.f32 %v298, 1.442695
        %v302 = vpow.pop %v301
        %v303 = vsel %vm282, %v300, 0.0
        %v304 = vrot.slane %v303, 4
        %v305 = vadd.f32 %v303, %v304
        %v306 = vrot.slane %v305, 2
        %v307 = vadd.f32 %v305, %v306
        %v308 = vrot.slane %v307, 1
        %v309 = vadd.f32 %v307, %v308
        %v310 = vsel %vm282, %v302, 0.0
        %v311 = vrot.slane %v310, 4
        %v312 = vadd.f32 %v310, %v311
        %v313 = vrot.slane %v312, 2
        %v314 = vadd.f32 %v312, %v313
        %v315 = vrot.slane %v314, 1
        %v316 = vadd.f32 %v314, %v315
        %v317 = vrcp.pop %v309
        %v318 = vrcp.pop %v316
        %v319 = vmul.f32 %v300, %v317
        %v320 = vmul.f32 %v302, %v318
        %v321 = vmul.f32 %v319, %v249
        %v322 = vmul.f32 %v320, %v272
        %v323 = vld [vmem:[%s2] sm:$0xff]
        %v324 = vld [vmem:[%s2 + $0x8] sm:$0xff]
        %v325 = vld [vmem:[%s2 + $0x10] sm:$0xff]
        %v326 = vld [vmem:[%s2 + $0x18] sm:$0xff]
        %vm327 = vcmask 31744
        %v329 = vsel %vm327, %v323, 0
        %v332 = vsel %vm327, %v324, 0
        %v335 = vsel %vm327, %v325, 0
        %v338 = vsel %vm327, %v326, 0
        %v341 = vsel %vm282, %v321, 0
        %v344 = vsel %vm282, %v322, 0
        %346 = vmatpush.msra.mxu0 0.0
        %347 = vmatpush.msra.mxu0 0.0
        %348 = vmatpush.msra.mxu0 0.0
        %349 = vmatpush.msra.mxu0 0.0
        %350 = vmatpush.msra.mxu0 0.0
        %351 = vmatpush.msra.mxu0 0.0
        %352 = vmatpush.msra.mxu0 0.0
        %353 = vmatpush.msra.mxu0 0.0
        %354 = vmatpush.msra.mxu0 0.0
        %355 = vmatpush.msra.mxu0 0.0
        %356 = vmatpush.msra.mxu0 0.0
        %357 = vmatpush.msra.mxu0 0.0
        %358 = vmatpush.msra.mxu0 0.0
        %359 = vmatpush.msra.mxu0 0.0
        %360 = vmatpush.msra.mxu0 0.0
        %361 = vmatpush.msra.mxu0 %v341
        %362 = vmatmul.f32.gmra.mxu0 %v329
        %v363 = vpop.f32.mrf.mxu0
        %v364 = vadd.f32 %v211, %v363
        %365 = vmatmul.f32.gmra.mxu0 %v332
        %v366 = vpop.f32.mrf.mxu0
        %v367 = vadd.f32 %v213, %v366
        %368 = vmatmul.f32.gmra.mxu0 %v335
        %v369 = vpop.f32.mrf.mxu0
        %v370 = vadd.f32 %v215, %v369
        %371 = vmatmul.f32.gmra.mxu0 %v338
        %v372 = vpop.f32.mrf.mxu0
        %v373 = vadd.f32 %v217, %v372
        %374 = vdwg.mxu0
        %375 = vmatpush.msra.mxu0 0.0
        %376 = vmatpush.msra.mxu0 0.0
        %377 = vmatpush.msra.mxu0 0.0
        %378 = vmatpush.msra.mxu0 0.0
        %379 = vmatpush.msra.mxu0 0.0
        %380 = vmatpush.msra.mxu0 0.0
        %381 = vmatpush.msra.mxu0 0.0
        %382 = vmatpush.msra.mxu0 0.0
        %383 = vmatpush.msra.mxu0 0.0
        %384 = vmatpush.msra.mxu0 0.0
        %385 = vmatpush.msra.mxu0 0.0
        %386 = vmatpush.msra.mxu0 0.0
        %387 = vmatpush.msra.mxu0 0.0
        %388 = vmatpush.msra.mxu0 0.0
        %389 = vmatpush.msra.mxu0 0.0
        %390 = vmatpush.msra.mxu0 %v344
        %391 = vmatmul.f32.gmra.mxu0 %v329
        %v392 = vpop.f32.mrf.mxu0
        %v393 = vadd.f32 %v212, %v392
        %394 = vmatmul.f32.gmra.mxu0 %v332
        %v395 = vpop.f32.mrf.mxu0
        %v396 = vadd.f32 %v214, %v395
        %397 = vmatmul.f32.gmra.mxu0 %v335
        %v398 = vpop.f32.mrf.mxu0
        %v399 = vadd.f32 %v216, %v398
        %400 = vmatmul.f32.gmra.mxu0 %v338
        %v401 = vpop.f32.mrf.mxu0
        %v402 = vadd.f32 %v218, %v401
        %403 = vdwg.mxu0
        %404 = vst [vmem:[%s208] sm:$0xff] %v364
        %405 = vst [vmem:[%s208 + $0x8] sm:$0xff] %v393
        %406 = vst [vmem:[%s208 + $0x10] sm:$0xff] %v367
        %407 = vst [vmem:[%s208 + $0x18] sm:$0xff] %v396
        %408 = vst [vmem:[%s208 + $0x20] sm:$0xff] %v370
        %409 = vst [vmem:[%s208 + $0x28] sm:$0xff] %v399
        %410 = vst [vmem:[%s208 + $0x30] sm:$0xff] %v373
        %411 = vst [vmem:[%s208 + $0x38] sm:$0xff] %v402
        %s412 = sand.u32 %s112, 1
        %s413 = scalar_lea.sflag [#allocation4], %s412
        %s414 = sand.u32 %s112, 1
        %s415 = smul.addr %s414, 64
        %s416 = scalar_lea.vmem [#allocation5], %s415
        // Predicated region
        $region37: #{tpu_custom_call.1} parent=31 // pred_check
          %p417 = pneg %p122
        $region38: #{tpu_custom_call.1} parent=31 // pred_check_branch
          %419 = sbr.rel (%p417) target = $region40
        $region39: #{tpu_custom_call.1} parent=31 // pred_region
          %s420 = smul.u32 2, %s25
          %422 = vsyncadd %s413, 0
          %s423 = smul.addr %s24, 8
          %s424 = sadd.s32 %s420, %s423
          %s425 = smul.addr %s424, 8
          %s426 = scalar_lea.hbm %s3, %s425
          %s427 = sshll.u32 %s416, 4
          %s428 = int_to_ptr.vmem [resolvable:$true] %s427
          %s429 = sshll.u32 %s426, 4
          %s430 = int_to_ptr.hbm [resolvable:$true] %s429
          %435 = dma.vmem_to_hbm [thread:$0]  %s428, 1024, %s430, %s413, 256, 256, 16
        $region40: #{tpu_custom_call.1} parent=31 // pred_fallthru
          _
      $region32: #{tpu_custom_call.1} parent=5 // pred_fallthru
        _
      %p436 = scmp.le.s32.totalorder 2, %s15
      // Predicated region
      $region41: #{tpu_custom_call.1} parent=5 // pred_check
        %p437 = pneg %p436
      $region42: #{tpu_custom_call.1} parent=5 // pred_check_branch
        %439 = sbr.rel (%p437) target = $region44
      $region43: #{tpu_custom_call.1} parent=5 // pred_region
        %s440 = ssub.s32 %s15, 2
        // Predicated region
        $region45: #{tpu_custom_call.1} parent=43 // pred_check
          %p441 = pneg %p128
        $region46: #{tpu_custom_call.1} parent=43 // pred_check_branch
          %443 = sbr.rel (%p441) target = $region48
        $region47: #{tpu_custom_call.1} parent=43 // pred_region
          %s444 = sand.u32 %s113, 1
          %s445 = scalar_lea.sflag [#allocation4], %s444
          %s446 = sand.u32 %s113, 1
          %s447 = smul.addr %s446, 64
          %s448 = scalar_lea.vmem [#allocation5], %s447
          %450 = dma.done %s445, 1024
        $region48: #{tpu_custom_call.1} parent=43 // pred_fallthru
          _
      $region44: #{tpu_custom_call.1} parent=5 // pred_fallthru
        _
    $region6: #{tpu_custom_call.1} parent=1 // loop_footer
      %s19 = sadd.s32 1, %s15
    $region7: #{tpu_custom_call.1} parent=1 // loop_footer_branch
      %14 = sbr.rel target = $region3
    $region8: #{tpu_custom_call.1} parent=1 // loop_exit
      _
    %451 = vsyncpa [#allocation3], 1
    %s452 = scalar_lea.sflag [#allocation3], 1
    %453 = vsyncpa %s452, 1
    %454 = vsyncpa [#allocation4], 1
    %s455 = scalar_lea.sflag [#allocation4], 1
    %456 = vsyncpa %s455, 1

</llo_original>
